<compile_context>
chip_gen: v5e
topology: v5e:2x2
jax: 0.10.0
libtpu: 0.0.40
codegen_flags: <defaults>
</compile_context>

<pallas_src>
import jax
import jax.numpy as jnp
from jax.experimental import pallas as pl
from jax.experimental.pallas import tpu as pltpu


_LANE = 128
_TARGET_BLOCK_BYTES = 2 * 1024 * 1024  # ~2 MiB/block; in+out double-buffered
                                        # => ~8 MiB VMEM, safe on v5e/v6e/v7x.
_MAX_TILE_C = 8192                      # lane-dense cap when tiling last dim


def _identity_copy_kernel(x_ref, o_ref):
    # Pure element copy: o = x (identity forward of GradientModule).
    o_ref[...] = x_ref[...]


def _min_sublane(itemsize):
    # Sub-32-bit dtypes pack along sublanes: (8,128) f32, (16,128) bf16,
    # (32,128) int8/fp8.
    return {4: 8, 2: 16, 1: 32}.get(itemsize, 8)


def _flat_2d_shape(x):
    """Pick a (rows, cols) view of the flat buffer.

    Identity is layout-agnostic, so prefer a lane-dense view (cols a multiple
    of 128, up to _MAX_TILE_C) when the total element count divides evenly;
    otherwise keep the original last dim.  Contiguous row-major reshape only,
    so this never costs an extra HBM pass.
    """
    total = x.size
    if total % _LANE == 0:
        cols = _LANE
        while cols * 2 <= _MAX_TILE_C and total % (cols * 2) == 0:
            cols *= 2
        return total // cols, cols
    cols = x.shape[-1]
    return total // cols, cols


def _choose_tiles(rows, cols, itemsize):
    sublane = _min_sublane(itemsize)

    # Last-dim tile: full dim when it fits the byte budget at the minimum
    # sublane count (a full dim is always a legal block dim), otherwise a
    # large lane-dense multiple of 128 so stores stay unmasked.
    if cols * sublane * itemsize <= _TARGET_BLOCK_BYTES:
        tile_c = cols
    else:
        tile_c = min(_MAX_TILE_C, (cols // _LANE) * _LANE)

    # Second-to-last-dim tile: fill the byte budget; keep it a multiple of the
    # dtype's native sublane count unless it covers the whole dim.
    tile_r = _TARGET_BLOCK_BYTES // max(1, tile_c * itemsize)
    tile_r = max(sublane, (tile_r // sublane) * sublane)
    if tile_r >= rows:
        tile_r = rows
    return tile_r, tile_c


def gradient_module_forward(x):
    """Pallas TPU implementation of GradientModule.forward (identity)."""
    if x.size == 0 or x.ndim == 0:
        # Degenerate shapes: identity is a pass-through.
        return x

    orig_shape = x.shape
    rows, cols = _flat_2d_shape(x)
    x2 = x.reshape(rows, cols) if x.shape != (rows, cols) else x
    itemsize = jnp.dtype(x2.dtype).itemsize

    tile_r, tile_c = _choose_tiles(rows, cols, itemsize)
    grid = (pl.cdiv(rows, tile_r), pl.cdiv(cols, tile_c))

    # Alias output onto the kernel input buffer (donated) whenever the input
    # to the pallas_call is a private intermediate (i.e. not the caller's
    # array itself), so no second HBM slab is allocated for the output.
    aliases = {0: 0} if x2 is not x else {}

    out = pl.pallas_call(
        _identity_copy_kernel,
        out_shape=jax.ShapeDtypeStruct((rows, cols), x2.dtype),
        grid_spec=pltpu.PrefetchScalarGridSpec(
            num_scalar_prefetch=0,
            grid=grid,
            in_specs=[pl.BlockSpec((tile_r, tile_c), lambda i, j: (i, j))],
            out_specs=pl.BlockSpec((tile_r, tile_c), lambda i, j: (i, j)),
        ),
        input_output_aliases=aliases,
        compiler_params=pltpu.CompilerParams(
            dimension_semantics=("parallel", "parallel"),
        ),
    )(x2)

    return out if out.shape == orig_shape else out.reshape(orig_shape)


if __name__ == "__main__":
    key = jax.random.PRNGKey(0)
    # NCHW-style input consistent with the conv-solver module: batch=2,
    # channels=4, spatial=16x16.
    x = jax.random.normal(key, (2, 4, 16, 16), dtype=jnp.float32)

    y = gradient_module_forward(x)
    y = jax.block_until_ready(y)

    assert y.shape == x.shape
    assert y.dtype == x.dtype
    assert bool(jnp.allclose(y, x)), "identity forward mismatch"

    print("KERNEL_OK")
</pallas_src>

<mosaic_0001>
module attributes {stable_mosaic.version = 11 : i64} {
  func.func @_identity_copy_kernel(%arg0: i32, %arg1: i32, %arg2: memref<1x2048xf32, #tpu.memory_space<vmem>>, %arg3: memref<1x2048xf32, #tpu.memory_space<vmem>>) attributes {dimension_semantics = [#tpu.dimension_semantics<parallel>, #tpu.dimension_semantics<parallel>], iteration_bounds = array<i64: 1, 1>, scalar_prefetch = 0 : i64, scratch_operands = 0 : i64, tpu.core_type = #tpu.core_type<tc>, window_params = [{transform_indices = @transform_0, window_bounds = array<i64: 1, 2048>}, {transform_indices = @transform_1, window_bounds = array<i64: 1, 2048>}]} {
    %c0 = arith.constant 0 : index
    %c0_0 = arith.constant 0 : index
    %0 = vector.load %arg2[%c0, %c0_0] : memref<1x2048xf32, #tpu.memory_space<vmem>>, vector<1x2048xf32>
    %c0_1 = arith.constant 0 : index
    %c0_2 = arith.constant 0 : index
    %1 = vector.load %arg3[%c0_1, %c0_2] : memref<1x2048xf32, #tpu.memory_space<vmem>>, vector<1x2048xf32>
    tpu.vector_store %arg3[%c0_1, %c0_2], %0 {strides = array<i32>} : memref<1x2048xf32, #tpu.memory_space<vmem>>, vector<1x2048xf32>,
    return
  }
  func.func @transform_0(%arg0: i32, %arg1: i32) -> (i32, i32) {
    %c0_i32 = arith.constant 0 : i32
    return %arg0, %arg1 : i32, i32
  }
  func.func @transform_1(%arg0: i32, %arg1: i32) -> (i32, i32) {
    %c0_i32 = arith.constant 0 : i32
    return %arg0, %arg1 : i32, i32
  }
}

</mosaic_0001>

<llo_original>
// kernel: tpu_custom_call.1
$region0: #{tpu_custom_call.1}
  #allocation0 [shape = 'u32[]', space=smem, size = 0x4, offset = 0x4, fixed_abs, tag = 'smem constant byte address 0x4 - core index']
  #allocation1 [shape = 'u32[72,128]{1,0:T(1,128)}', space=vmem, size = 0x9000, scoped, tag = 'internal scratch']
  %s0 = inlined_call_operand.hbm [shape: f32[1,2048], index: 0, kind: input, shape index: {}, may-alias: {0,1}]
  %s1 = inlined_call_operand.hbm [shape: f32[1,2048], index: 1, kind: output, shape index: {}, may-alias: {0,1}]
  %s2 = sld [smem:[#allocation0]]
  $region18: #{tpu_custom_call.1} parent=0
    _
  %s4 = ssub.s32 1, %s2
  %s5 = scalar_select 0, %s4, %s2
  $region1: #{tpu_custom_call.1} parent=0
    #allocation2 [shape = 'u8[8192]{0}', space=vmem, size = 0x2000, scoped, tag = 'input window, operand 0, single buffered']
    #allocation3 [shape = 's32[1]{0}', space=sflag, size = 0x4, scoped, tag = 'scoped memory for tpu_custom_call.1']
    #allocation4 [shape = 's32[1]{0}', space=sflag, size = 0x4, scoped, tag = 'scoped memory for tpu_custom_call.1']
    #allocation5 [shape = 'u8[8192]{0}', space=vmem, size = 0x2000, scoped, tag = 'output window, operand 0, single buffered']
    %6 = vsyncpa [#allocation3], 0
    %7 = vsyncpa [#allocation4], 0
    // Predicated region
    $region2: #{tpu_custom_call.1} parent=1 // pred_check
      _
    $region3: #{tpu_custom_call.1} parent=1 // pred_check_branch
      %9 = sbr.rel (0) target = $region5
    $region4: #{tpu_custom_call.1} parent=1 // pred_region
      %11 = vsyncadd [#allocation3], 0
      %s13 = sshll.u32 %s0, 4
      %s14 = int_to_ptr.hbm [resolvable:$true] %s13
      %s15 = sshll.u32 [#allocation2], 4
      %s16 = int_to_ptr.vmem [resolvable:$true] %s15
      %18 = dma.hbm_to_vmem [thread:$0]  %s14, 256, %s16, [#allocation3]
    $region5: #{tpu_custom_call.1} parent=1 // pred_fallthru
      _
    // Predicated region
    $region6: #{tpu_custom_call.1} parent=1 // pred_check
      _
    $region7: #{tpu_custom_call.1} parent=1 // pred_check_branch
      %20 = sbr.rel (0) target = $region9
    $region8: #{tpu_custom_call.1} parent=1 // pred_region
      %22 = dma.done [#allocation3], 256
    $region9: #{tpu_custom_call.1} parent=1 // pred_fallthru
      _
    %v23 = vld [vmem:[#allocation2] sm:$0xff]
    %v24 = vld [vmem:[#allocation2 + $0x8] sm:$0xff]
    %25 = vst [vmem:[#allocation5] sm:$0xff] %v23
    %26 = vst [vmem:[#allocation5 + $0x8] sm:$0xff] %v24
    // Predicated region
    $region10: #{tpu_custom_call.1} parent=1 // pred_check
      _
    $region11: #{tpu_custom_call.1} parent=1 // pred_check_branch
      %28 = sbr.rel (0) target = $region13
    $region12: #{tpu_custom_call.1} parent=1 // pred_region
      %30 = vsyncadd [#allocation4], 0
      %s32 = sshll.u32 [#allocation5], 4
      %s33 = int_to_ptr.vmem [resolvable:$true] %s32
      %s34 = sshll.u32 %s1, 4
      %s35 = int_to_ptr.hbm [resolvable:$true] %s34
      %37 = dma.vmem_to_hbm [thread:$0]  %s33, 256, %s35, [#allocation4]
    $region13: #{tpu_custom_call.1} parent=1 // pred_fallthru
      _
    // Predicated region
    $region14: #{tpu_custom_call.1} parent=1 // pred_check
      _
    $region15: #{tpu_custom_call.1} parent=1 // pred_check_branch
      %39 = sbr.rel (0) target = $region17
    $region16: #{tpu_custom_call.1} parent=1 // pred_region
      %41 = dma.done [#allocation4], 256
    $region17: #{tpu_custom_call.1} parent=1 // pred_fallthru
      _
    %42 = vsyncpa [#allocation3], 1
    %43 = vsyncpa [#allocation4], 1

</llo_original>
